<compile_context>
chip_gen: v7x
topology: tpu7x:2x2x1
jax: 0.10.0
libtpu: 0.0.40
codegen_flags: <defaults>
</compile_context>

<pallas_src>
import functools

import jax
import jax.numpy as jnp
from jax.experimental import pallas as pl
from jax.experimental.pallas import tpu as pltpu


def _copy_kernel(x_ref, o_ref):
    # Pure copy: (TN, L) tile in -> (TN, L) tile out. No compute, lane-dense.
    o_ref[...] = x_ref[...]


def _round_up(a, b):
    return -(-a // b) * b


def _lane_dense_shape(n_rows, n_cols):
    """Metadata-only re-slab of a contiguous (n_rows, n_cols) buffer so the
    last (lane) dim is a multiple of 128 whenever the element count allows it.
    Avoids masked partial stores for small / ragged C (typical post-pool C)."""
    if n_cols >= 128 and n_cols % 128 == 0:
        return n_rows, n_cols
    total = n_rows * n_cols
    for lanes in (1024, 512, 256, 128):
        if total % lanes == 0:
            return total // lanes, lanes
    return n_rows, n_cols  # tiny/ragged fallback; Pallas masks the partial lanes


def _row_tile(n_rows, n_cols, itemsize):
    """Row tile for the (n_rows, n_cols) lane-dense copy.

    - sublane-pack aligned (8/16/32 rows for 32/16/8-bit dtypes),
    - ~4 MiB per tile => (in + out) x double-buffer ~= 16 MiB pipelined
      footprint (legal everywhere given the explicit vmem_limit_bytes below,
      and <= half of v7x's 64 MiB physical VMEM so fused neighbors fit),
    - capped so the grid has >= ~4 steps whenever n_rows allows it, so the
      "parallel" row axis feeds both v7x TensorCores.
    """
    pack = {4: 8, 2: 16, 1: 32}.get(int(itemsize), 8)
    budget_bytes = 4 * 1024 * 1024
    rows = (budget_bytes // max(1, n_cols * int(itemsize))) // pack * pack
    rows = max(rows, pack)
    if n_rows > pack:
        rows = min(rows, _round_up(pl.cdiv(n_rows, 4), pack))
    return min(rows, n_rows)


def flatten2d(x2d, *, tile_rows=None, in_place=False):
    """Pallas copy of the already-flattened (N, C) activations.

    With in_place=True the pallas_call aliases its input to its output
    (input_output_aliases={0: 0}); use it inside a jit where the caller donates
    the input so no second HBM buffer is allocated for the copy.
    """
    n, c = x2d.shape
    rows, lanes = _lane_dense_shape(n, c)
    slab = x2d.reshape(rows, lanes)  # metadata-only: data is contiguous row-major

    itemsize = int(slab.dtype.itemsize)
    tn = tile_rows if tile_rows is not None else _row_tile(rows, lanes, itemsize)
    tn = min(tn, rows)

    total_bytes = rows * lanes * itemsize
    out = pl.pallas_call(
        _copy_kernel,
        out_shape=jax.ShapeDtypeStruct((rows, lanes), slab.dtype),
        grid=(pl.cdiv(rows, tn),),
        in_specs=[pl.BlockSpec((tn, lanes), lambda i: (i, 0))],
        out_specs=pl.BlockSpec((tn, lanes), lambda i: (i, 0)),
        input_output_aliases=({0: 0} if in_place else {}),
        cost_estimate=pl.CostEstimate(
            flops=0, transcendentals=0, bytes_accessed=2 * total_bytes),
        compiler_params=pltpu.CompilerParams(
            # Rows are independent: lets v7x's two TensorCores each stream half.
            dimension_semantics=("parallel",),
            # 16 MiB pipelined footprint exactly hits v5e's 16 MiB scoped
            # default; raise the limit explicitly (usage stays ~16 MiB).
            vmem_limit_bytes=64 * 1024 * 1024,
        ),
    )(slab)
    return out.reshape(n, c)


def flatten(x, *, tile_rows=None, in_place=False):
    """Equivalent of Flatten.forward: x[:, :, 0, 0] for x of shape (N, C, 1, 1)."""
    assert x.shape[2] == 1 and x.shape[3] == 1
    n, c = x.shape[0], x.shape[1]
    # Metadata-only squeeze of the trailing unit dims (no HBM traffic).
    return flatten2d(x.reshape(n, c), tile_rows=tile_rows, in_place=in_place)


if __name__ == "__main__":
    key = jax.random.PRNGKey(0)

    # 1) Module-contract shape (N, C, 1, 1): tiny ragged C falls back to a
    #    single full-extent (2, 4) block.
    x = jax.random.normal(key, (2, 4, 1, 1), dtype=jnp.float32)
    ref = x[:, :, 0, 0]
    out = flatten(x)
    jax.block_until_ready(out)
    assert out.shape == (2, 4) and out.dtype == x.dtype
    assert jnp.array_equal(out, ref)

    # 2) Multi-step pipelined path: C = 128 (lane-dense); the auto row tile caps
    #    the grid at >= 4 steps so the v7x megacore split has work.
    x2 = jax.random.normal(jax.random.PRNGKey(0), (64, 128, 1, 1), dtype=jnp.float32)
    out2 = flatten(x2)
    jax.block_until_ready(out2)
    assert jnp.array_equal(out2, x2[:, :, 0, 0])

    # 3) Ragged C repacked to a lane-dense slab: (6, 64) copied as (3, 128).
    x3 = jax.random.normal(jax.random.PRNGKey(0), (6, 64, 1, 1), dtype=jnp.float32)
    out3 = flatten(x3)
    jax.block_until_ready(out3)
    assert jnp.array_equal(out3, x3[:, :, 0, 0])

    # 4) In-place (aliased) copy under jit with a donated input: no second HBM
    #    buffer is allocated for the output.
    x4 = jax.random.normal(jax.random.PRNGKey(1), (64, 128), dtype=jnp.float32)
    ref4 = jnp.copy(x4)  # independent buffer; x4's buffer is donated below
    flatten2d_inplace = jax.jit(
        functools.partial(flatten2d, in_place=True), donate_argnums=0)
    out4 = flatten2d_inplace(x4)
    jax.block_until_ready(out4)
    assert jnp.array_equal(out4, ref4)

    print("KERNEL_OK")
</pallas_src>

<mosaic_0001>
module attributes {stable_mosaic.version = 11 : i64} {
  func.func @_copy_kernel(%arg0: i32, %arg1: memref<2x4xf32, #tpu.memory_space<vmem>>, %arg2: memref<2x4xf32, #tpu.memory_space<vmem>>) attributes {dimension_semantics = [#tpu.dimension_semantics<parallel>], iteration_bounds = array<i64: 1>, scalar_prefetch = 0 : i64, scratch_operands = 0 : i64, tpu.core_type = #tpu.core_type<tc>, window_params = [{transform_indices = @transform_0, window_bounds = array<i64: 2, 4>}, {transform_indices = @transform_1, window_bounds = array<i64: 2, 4>}]} {
    %c0 = arith.constant 0 : index
    %c0_0 = arith.constant 0 : index
    %0 = vector.load %arg1[%c0, %c0_0] : memref<2x4xf32, #tpu.memory_space<vmem>>, vector<2x4xf32>
    %c0_1 = arith.constant 0 : index
    %c0_2 = arith.constant 0 : index
    %1 = vector.load %arg2[%c0_1, %c0_2] : memref<2x4xf32, #tpu.memory_space<vmem>>, vector<2x4xf32>
    tpu.vector_store %arg2[%c0_1, %c0_2], %0 {strides = array<i32>} : memref<2x4xf32, #tpu.memory_space<vmem>>, vector<2x4xf32>,
    return
  }
  func.func @transform_0(%arg0: i32) -> (i32, i32) {
    %c0_i32 = arith.constant 0 : i32
    %c0_i32_0 = arith.constant 0 : i32
    return %arg0, %c0_i32 : i32, i32
  }
  func.func @transform_1(%arg0: i32) -> (i32, i32) {
    %c0_i32 = arith.constant 0 : i32
    %c0_i32_0 = arith.constant 0 : i32
    return %arg0, %c0_i32 : i32, i32
  }
}

</mosaic_0001>

<llo_original>
// kernel: tpu_custom_call.1
$region0: #{tpu_custom_call.1}
  #allocation0 [shape = 'u32[]', space=smem, size = 0x4, offset = 0x4, fixed_abs, tag = 'smem constant byte address 0x4 - core index']
  #allocation1 [shape = 'u32[144,128]{1,0:T(1,128)}', space=vmem, size = 0x12000, scoped, tag = 'internal scratch']
  %s0 = inlined_call_operand.hbm [shape: f32[2,4], index: 0, kind: input, shape index: {}]
  %s1 = inlined_call_operand.hbm [shape: f32[2,4], index: 1, kind: output, shape index: {}]
  %s2 = sld [smem:[#allocation0]]
  $region18: #{tpu_custom_call.1} parent=0
    _
  %s4 = ssub.s32 1, %s2
  %s5 = scalar_select 0, %s4, %s2
  $region1: #{tpu_custom_call.1} parent=0
    #allocation2 [shape = 'u8[1024]{0}', space=vmem, size = 0x400, scoped, tag = 'input window, operand 0, single buffered']
    #allocation3 [shape = 's32[1]{0}', space=sflag, size = 0x4, scoped, tag = 'scoped memory for tpu_custom_call.1']
    #allocation4 [shape = 's32[1]{0}', space=sflag, size = 0x4, scoped, tag = 'scoped memory for tpu_custom_call.1']
    #allocation5 [shape = 'u8[1024]{0}', space=vmem, size = 0x400, scoped, tag = 'output window, operand 0, single buffered']
    %6 = vsyncpa [#allocation3], 0
    %7 = vsyncpa [#allocation4], 0
    // Predicated region
    $region2: #{tpu_custom_call.1} parent=1 // pred_check
      _
    $region3: #{tpu_custom_call.1} parent=1 // pred_check_branch
      %9 = sbr.rel (0) target = $region5
    $region4: #{tpu_custom_call.1} parent=1 // pred_region
      %s11 = ssub.s32 32, 32
      %12 = vsyncadd [#allocation3], %s11
      %s14 = sshll.u32 [#allocation2], 4
      %s15 = int_to_ptr.vmem [resolvable:$true] %s14
      %17 = dma.hbm_to_vmem [thread:$0]  %s0, 32, %s15, [#allocation3]
    $region5: #{tpu_custom_call.1} parent=1 // pred_fallthru
      _
    // Predicated region
    $region6: #{tpu_custom_call.1} parent=1 // pred_check
      _
    $region7: #{tpu_custom_call.1} parent=1 // pred_check_branch
      %19 = sbr.rel (0) target = $region9
    $region8: #{tpu_custom_call.1} parent=1 // pred_region
      %20 = dma.done [#allocation3], 32
    $region9: #{tpu_custom_call.1} parent=1 // pred_fallthru
      _
    %v21 = vld [vmem:[#allocation2] sm:$0x3]
    %vm22 = vcmask 25600
    %23 = vst.msk [vmem:[#allocation5] sm:$0x3] %vm22, %v21
    // Predicated region
    $region10: #{tpu_custom_call.1} parent=1 // pred_check
      _
    $region11: #{tpu_custom_call.1} parent=1 // pred_check_branch
      %25 = sbr.rel (0) target = $region13
    $region12: #{tpu_custom_call.1} parent=1 // pred_region
      %s27 = ssub.s32 32, 32
      %28 = vsyncadd [#allocation4], %s27
      %s30 = sshll.u32 [#allocation5], 4
      %s31 = int_to_ptr.vmem [resolvable:$true] %s30
      %33 = dma.vmem_to_hbm [thread:$0]  %s31, 32, %s1, [#allocation4]
    $region13: #{tpu_custom_call.1} parent=1 // pred_fallthru
      _
    // Predicated region
    $region14: #{tpu_custom_call.1} parent=1 // pred_check
      _
    $region15: #{tpu_custom_call.1} parent=1 // pred_check_branch
      %35 = sbr.rel (0) target = $region17
    $region16: #{tpu_custom_call.1} parent=1 // pred_region
      %36 = dma.done [#allocation4], 32
    $region17: #{tpu_custom_call.1} parent=1 // pred_fallthru
      _
    %37 = vsyncpa [#allocation3], 1
    %38 = vsyncpa [#allocation4], 1

</llo_original>
